<compile_context>
chip_gen: v7x
topology: tpu7x:2x2x1
jax: 0.10.0
libtpu: 0.0.40
codegen_flags: <defaults>
</compile_context>

<pallas_src>
import jax
import jax.numpy as jnp
from jax.experimental import pallas as pl
from jax.experimental.pallas import tpu as pltpu


def _round_up(x, m):
    return ((x + m - 1) // m) * m


def _lane_pad(n):
    return _round_up(max(int(n), 128), 128)


# --------------------------------------------------------------------------- #
# Kernel
# --------------------------------------------------------------------------- #
def _critic_kernel(stt_ref, act_ref,
                   w1_ref, b1_ref,
                   w2_ref, b2_ref,
                   w3_ref, b3_ref,
                   out_ref):
    mm_dtype = w1_ref.dtype  # MXU operand dtype (f32 or bf16)

    # State*action gate in f32 on the VPU.  Inputs arrive straight from HBM as
    # f32 (no wrapper cast pass); only the MXU operands get narrowed.
    x = stt_ref[...] * act_ref[...]

    # Layer 1: Linear + ReLU (MXU matmul, f32 accumulation; bias/ReLU on VPU).
    h1 = jnp.dot(x.astype(mm_dtype), w1_ref[...],
                 preferred_element_type=jnp.float32) + b1_ref[...]
    h1 = jnp.maximum(h1, 0.0)

    # Layer 2: Linear + ReLU.
    h2 = jnp.dot(h1.astype(mm_dtype), w2_ref[...],
                 preferred_element_type=jnp.float32) + b2_ref[...]
    h2 = jnp.maximum(h2, 0.0)

    # Layer 3: Linear (true output width; narrow masked store is cheap, the
    # HBM writeback only carries the real bytes).
    out = jnp.dot(h2.astype(mm_dtype), w3_ref[...],
                  preferred_element_type=jnp.float32) + b3_ref[...]
    out_ref[...] = out.astype(out_ref.dtype)


# --------------------------------------------------------------------------- #
# Wrapper
# --------------------------------------------------------------------------- #
def prepare_critic_params(params, compute_dtype=jnp.float32):
    """One-time cast of weights to the MXU operand dtype (biases stay f32).

    Call this once outside the per-step forward so repeated inference calls do
    not pay an extra HBM pass re-casting the weights every time.
    """
    return {
        "w1": jnp.asarray(params["w1"], compute_dtype),
        "w2": jnp.asarray(params["w2"], compute_dtype),
        "w3": jnp.asarray(params["w3"], compute_dtype),
        "b1": jnp.asarray(params["b1"], jnp.float32).reshape(1, -1),
        "b2": jnp.asarray(params["b2"], jnp.float32).reshape(1, -1),
        "b3": jnp.asarray(params["b3"], jnp.float32).reshape(1, -1),
    }


def _build_specs(tb, in_size, hidden, out_size, single_buffer_weights):
    def resident(shape):
        idx = lambda i: (0,) * len(shape)
        if single_buffer_weights:
            # Grid-invariant weights/biases: single VMEM copy (no pointless
            # double buffering) — halves resident-weight VMEM.
            return pl.BlockSpec(shape, idx,
                                pipeline_mode=pl.Buffered(buffer_count=1))
        return pl.BlockSpec(shape, idx)

    in_specs = [
        pl.BlockSpec((tb, in_size), lambda i: (i, 0)),   # stt (batch-tiled)
        pl.BlockSpec((tb, in_size), lambda i: (i, 0)),   # act (batch-tiled)
        resident((in_size, hidden)),                     # w1 (VMEM-resident)
        resident((1, hidden)),                           # b1
        resident((hidden, hidden)),                      # w2
        resident((1, hidden)),                           # b2
        resident((hidden, out_size)),                    # w3
        resident((1, out_size)),                         # b3
    ]
    # Output block keeps the true feature width (legal: last dim equals the
    # full array dim).  HBM writeback is only the real data.
    out_spec = pl.BlockSpec((tb, out_size), lambda i: (i, 0))
    return in_specs, out_spec


def critic_forward(stt, act, params, *, block_batch=2048):
    """Critic forward pass as a single batch-tiled Pallas kernel.

    stt, act: [batch, input_size] float32 (passed through untouched — no
              wrapper-side pad/cast passes).
    params:   dict from prepare_critic_params: w1 [in,h], b1 [1,h],
              w2 [h,h], b2 [1,h], w3 [h,out], b3 [1,out].  Weight dtype
              (f32 or bf16) selects the MXU operand dtype; accumulation and
              all elementwise math stay f32.
    returns:  [batch, output_size] float32
    """
    batch, in_size = stt.shape
    hidden = params["w1"].shape[1]
    out_size = params["w3"].shape[1]
    compute_dtype = params["w1"].dtype
    itemsize = jnp.dtype(compute_dtype).itemsize

    # ---- batch tile: multiple of 8 sublanes; ensure >= 2 grid steps when the
    # batch allows it (so v7x's two TensorCores both get work under
    # dimension_semantics=("parallel",)), otherwise as large as possible to
    # amortize per-step overhead on v5e/v6e. ----
    tb = min(int(block_batch),
             _round_up(pl.cdiv(batch, 2), 8),
             _round_up(batch, 8))
    tb = max(tb, 8)
    # Ragged last block is fine: Pallas clips the OOB rows on read (junk rows
    # compute independently) and drops their writes; nothing padded hits HBM.
    grid = (pl.cdiv(batch, tb),)

    # ---- VMEM budget (layout-padded last dims), sized per generation ----
    lane_in, lane_h, lane_out = (_lane_pad(in_size), _lane_pad(hidden),
                                 _lane_pad(out_size))
    weight_vmem = 2 * (  # conservative: assume double-buffered weights
        (in_size * lane_h + hidden * lane_h + hidden * lane_out) * itemsize
        + (2 * 8 * lane_h + 8 * lane_out) * 4)
    act_vmem = 2 * 2 * tb * lane_in * 4 + 2 * tb * lane_out * 4
    temp_vmem = 3 * tb * lane_h * 4
    vmem_need = weight_vmem + act_vmem + temp_vmem + (2 << 20)

    try:
        vmem_cap = int(pltpu.get_tpu_info().vmem_capacity_bytes)
    except Exception:  # pragma: no cover - conservative fallback (v7x size)
        vmem_cap = 64 * 1024 * 1024
    headroom = 8 << 20
    vmem_limit = min(vmem_cap - headroom, max(32 << 20, 2 * vmem_need))
    vmem_limit = int(max(vmem_limit, 16 << 20))

    # ---- scheduling hint with the TRUE (unpadded) byte counts ----
    weight_elems = in_size * hidden + hidden * hidden + hidden * out_size
    cost = pl.CostEstimate(
        flops=int(2 * batch * weight_elems),
        transcendentals=0,
        bytes_accessed=int(2 * batch * in_size * stt.dtype.itemsize
                           + batch * out_size * 4
                           + weight_elems * itemsize
                           + (2 * hidden + out_size) * 4),
    )

    out_shape = jax.ShapeDtypeStruct((batch, out_size), jnp.float32)

    def run(single_buffer_weights):
        in_specs, out_spec = _build_specs(tb, in_size, hidden, out_size,
                                          single_buffer_weights)
        return pl.pallas_call(
            _critic_kernel,
            out_shape=out_shape,
            grid=grid,
            in_specs=in_specs,
            out_specs=out_spec,
            compiler_params=pltpu.CompilerParams(
                dimension_semantics=("parallel",),
                vmem_limit_bytes=vmem_limit),
            cost_estimate=cost,
        )(stt, act,
          params["w1"], params["b1"],
          params["w2"], params["b2"],
          params["w3"], params["b3"])

    if hasattr(pl, "Buffered"):
        try:
            return run(True)
        except Exception:
            # Fall back to default (double-buffered) weight specs if this jax
            # version does not accept Buffered(1) for grid-invariant inputs.
            pass
    return run(False)


# --------------------------------------------------------------------------- #
# Parameter init + reference
# --------------------------------------------------------------------------- #
def init_critic_params(key, input_size, hidden_size, output_size):
    """Deterministic synthetic parameter init (PyTorch-style uniform fan-in)."""
    ks = jax.random.split(key, 6)

    def linear(kw, kb, fan_in, fan_out):
        bound = 1.0 / jnp.sqrt(fan_in)
        w = jax.random.uniform(kw, (fan_in, fan_out), jnp.float32, -bound, bound)
        b = jax.random.uniform(kb, (1, fan_out), jnp.float32, -bound, bound)
        return w, b

    w1, b1 = linear(ks[0], ks[1], input_size, hidden_size)
    w2, b2 = linear(ks[2], ks[3], hidden_size, hidden_size)
    w3, b3 = linear(ks[4], ks[5], hidden_size, output_size)
    return {"w1": w1, "b1": b1, "w2": w2, "b2": b2, "w3": w3, "b3": b3}


def _reference_forward(stt, act, p):
    x = stt * act
    x = jnp.maximum(x @ p["w1"] + p["b1"], 0.0)
    x = jnp.maximum(x @ p["w2"] + p["b2"], 0.0)
    return x @ p["w3"] + p["b3"]


if __name__ == "__main__":
    batch = 8
    input_size = 32
    hidden_size = 32
    output_size = 1

    key = jax.random.PRNGKey(0)
    k_stt, k_act, k_params = jax.random.split(key, 3)

    stt = jax.random.normal(k_stt, (batch, input_size), jnp.float32)
    act = jax.random.normal(k_act, (batch, input_size), jnp.float32)
    raw_params = init_critic_params(k_params, input_size, hidden_size,
                                    output_size)

    # f32 path (single grid step; exact vs reference).
    params_f32 = prepare_critic_params(raw_params, jnp.float32)
    out = jax.block_until_ready(critic_forward(stt, act, params_f32))
    ref = _reference_forward(stt, act, raw_params)
    assert out.shape == (batch, output_size), out.shape
    assert jnp.allclose(out, ref, atol=1e-5, rtol=1e-5), (
        f"max abs err {jnp.max(jnp.abs(out - ref))}")

    # Ragged multi-block grid path (batch not a multiple of the tile;
    # exercises partial-block reads/writes and resident-weight BlockSpecs).
    batch2 = 300
    k2a, k2b = jax.random.split(jax.random.PRNGKey(1))
    stt2 = jax.random.normal(k2a, (batch2, input_size), jnp.float32)
    act2 = jax.random.normal(k2b, (batch2, input_size), jnp.float32)
    out2 = jax.block_until_ready(
        critic_forward(stt2, act2, params_f32, block_batch=128))
    ref2 = _reference_forward(stt2, act2, raw_params)
    assert out2.shape == (batch2, output_size), out2.shape
    assert jnp.allclose(out2, ref2, atol=1e-5, rtol=1e-5), (
        f"max abs err {jnp.max(jnp.abs(out2 - ref2))}")

    # bf16 MXU-operand path (weights cast once outside the forward; the
    # state*action gate, bias adds and ReLUs stay f32 inside the kernel).
    params_bf16 = prepare_critic_params(raw_params, jnp.bfloat16)
    out_bf16 = jax.block_until_ready(critic_forward(stt, act, params_bf16))
    assert out_bf16.shape == (batch, output_size), out_bf16.shape
    assert jnp.allclose(out_bf16, ref, atol=1e-1, rtol=1e-1), (
        f"max abs err {jnp.max(jnp.abs(out_bf16 - ref))}")

    print("KERNEL_OK")
</pallas_src>

<mosaic_0001>
module attributes {stable_mosaic.version = 11 : i64} {
  func.func @_critic_kernel(%arg0: i32, %arg1: memref<8x32xf32, #tpu.memory_space<vmem>>, %arg2: memref<8x32xf32, #tpu.memory_space<vmem>>, %arg3: memref<32x32xf32, #tpu.memory_space<vmem>>, %arg4: memref<1x32xf32, #tpu.memory_space<vmem>>, %arg5: memref<32x32xf32, #tpu.memory_space<vmem>>, %arg6: memref<1x32xf32, #tpu.memory_space<vmem>>, %arg7: memref<32x1xf32, #tpu.memory_space<vmem>>, %arg8: memref<1x1xf32, #tpu.memory_space<vmem>>, %arg9: memref<8x1xf32, #tpu.memory_space<vmem>>) attributes {dimension_semantics = [#tpu.dimension_semantics<parallel>], iteration_bounds = array<i64: 1>, scalar_prefetch = 0 : i64, scratch_operands = 0 : i64, tpu.core_type = #tpu.core_type<tc>, window_params = [{transform_indices = @transform_0, window_bounds = array<i64: 8, 32>}, {transform_indices = @transform_1, window_bounds = array<i64: 8, 32>}, {pipeline_mode = #tpu.pipeline_mode<synchronous>, transform_indices = @transform_2, window_bounds = array<i64: 32, 32>}, {pipeline_mode = #tpu.pipeline_mode<synchronous>, transform_indices = @transform_3, window_bounds = array<i64: 1, 32>}, {pipeline_mode = #tpu.pipeline_mode<synchronous>, transform_indices = @transform_4, window_bounds = array<i64: 32, 32>}, {pipeline_mode = #tpu.pipeline_mode<synchronous>, transform_indices = @transform_5, window_bounds = array<i64: 1, 32>}, {pipeline_mode = #tpu.pipeline_mode<synchronous>, transform_indices = @transform_6, window_bounds = array<i64: 32, 1>}, {pipeline_mode = #tpu.pipeline_mode<synchronous>, transform_indices = @transform_7, window_bounds = array<i64: 1, 1>}, {transform_indices = @transform_8, window_bounds = array<i64: 8, 1>}]} {
    %c0 = arith.constant 0 : index
    %c0_0 = arith.constant 0 : index
    %0 = vector.load %arg1[%c0, %c0_0] : memref<8x32xf32, #tpu.memory_space<vmem>>, vector<8x32xf32>
    %c0_1 = arith.constant 0 : index
    %c0_2 = arith.constant 0 : index
    %1 = vector.load %arg2[%c0_1, %c0_2] : memref<8x32xf32, #tpu.memory_space<vmem>>, vector<8x32xf32>
    %2 = arith.mulf %0, %1 : vector<8x32xf32>
    %c0_3 = arith.constant 0 : index
    %c0_4 = arith.constant 0 : index
    %3 = vector.load %arg3[%c0_3, %c0_4] : memref<32x32xf32, #tpu.memory_space<vmem>>, vector<32x32xf32>
    %cst = arith.constant dense<0.000000e+00> : vector<8x32xf32>
    %4 = tpu.matmul %2, %3, %cst {dimension_numbers = #tpu.dot_dimension_numbers<[1], [0], [0], [1], [0, 0, 1, 1], [], []>} : vector<8x32xf32>, vector<32x32xf32>, vector<8x32xf32> -> vector<8x32xf32>
    %c0_5 = arith.constant 0 : index
    %c0_6 = arith.constant 0 : index
    %5 = vector.load %arg4[%c0_5, %c0_6] : memref<1x32xf32, #tpu.memory_space<vmem>>, vector<1x32xf32>
    %6 = vector.broadcast %5 : vector<1x32xf32> to vector<8x32xf32>
    %7 = arith.addf %4, %6 : vector<8x32xf32>
    %cst_7 = arith.constant 0.000000e+00 : f32
    %8 = vector.broadcast %cst_7 : f32 to vector<8x32xf32>
    %9 = arith.maximumf %7, %8 : vector<8x32xf32>
    %c0_8 = arith.constant 0 : index
    %c0_9 = arith.constant 0 : index
    %10 = vector.load %arg5[%c0_8, %c0_9] : memref<32x32xf32, #tpu.memory_space<vmem>>, vector<32x32xf32>
    %cst_10 = arith.constant dense<0.000000e+00> : vector<8x32xf32>
    %11 = tpu.matmul %9, %10, %cst_10 {dimension_numbers = #tpu.dot_dimension_numbers<[1], [0], [0], [1], [0, 0, 1, 1], [], []>} : vector<8x32xf32>, vector<32x32xf32>, vector<8x32xf32> -> vector<8x32xf32>
    %c0_11 = arith.constant 0 : index
    %c0_12 = arith.constant 0 : index
    %12 = vector.load %arg6[%c0_11, %c0_12] : memref<1x32xf32, #tpu.memory_space<vmem>>, vector<1x32xf32>
    %13 = vector.broadcast %12 : vector<1x32xf32> to vector<8x32xf32>
    %14 = arith.addf %11, %13 : vector<8x32xf32>
    %cst_13 = arith.constant 0.000000e+00 : f32
    %15 = vector.broadcast %cst_13 : f32 to vector<8x32xf32>
    %16 = arith.maximumf %14, %15 : vector<8x32xf32>
    %c0_14 = arith.constant 0 : index
    %c0_15 = arith.constant 0 : index
    %17 = vector.load %arg7[%c0_14, %c0_15] : memref<32x1xf32, #tpu.memory_space<vmem>>, vector<32x1xf32>
    %cst_16 = arith.constant dense<0.000000e+00> : vector<8x1xf32>
    %18 = tpu.matmul %16, %17, %cst_16 {dimension_numbers = #tpu.dot_dimension_numbers<[1], [0], [0], [1], [0, 0, 1, 1], [], []>} : vector<8x32xf32>, vector<32x1xf32>, vector<8x1xf32> -> vector<8x1xf32>
    %c0_17 = arith.constant 0 : index
    %c0_18 = arith.constant 0 : index
    %19 = vector.load %arg8[%c0_17, %c0_18] : memref<1x1xf32, #tpu.memory_space<vmem>>, vector<1x1xf32>
    %20 = vector.broadcast %19 : vector<1x1xf32> to vector<8x1xf32>
    %21 = arith.addf %18, %20 : vector<8x1xf32>
    %c0_19 = arith.constant 0 : index
    %c0_20 = arith.constant 0 : index
    %22 = vector.load %arg9[%c0_19, %c0_20] : memref<8x1xf32, #tpu.memory_space<vmem>>, vector<8x1xf32>
    tpu.vector_store %arg9[%c0_19, %c0_20], %21 {strides = array<i32>} : memref<8x1xf32, #tpu.memory_space<vmem>>, vector<8x1xf32>,
    return
  }
  func.func @transform_0(%arg0: i32) -> (i32, i32) {
    %c0_i32 = arith.constant 0 : i32
    %c0_i32_0 = arith.constant 0 : i32
    return %arg0, %c0_i32 : i32, i32
  }
  func.func @transform_1(%arg0: i32) -> (i32, i32) {
    %c0_i32 = arith.constant 0 : i32
    %c0_i32_0 = arith.constant 0 : i32
    return %arg0, %c0_i32 : i32, i32
  }
  func.func @transform_2(%arg0: i32) -> (i32, i32) {
    %c0_i32 = arith.constant 0 : i32
    %c0_i32_0 = arith.constant 0 : i32
    %c0_i32_1 = arith.constant 0 : i32
    return %c0_i32, %c0_i32_0 : i32, i32
  }
  func.func @transform_3(%arg0: i32) -> (i32, i32) {
    %c0_i32 = arith.constant 0 : i32
    %c0_i32_0 = arith.constant 0 : i32
    %c0_i32_1 = arith.constant 0 : i32
    return %c0_i32, %c0_i32_0 : i32, i32
  }
  func.func @transform_4(%arg0: i32) -> (i32, i32) {
    %c0_i32 = arith.constant 0 : i32
    %c0_i32_0 = arith.constant 0 : i32
    %c0_i32_1 = arith.constant 0 : i32
    return %c0_i32, %c0_i32_0 : i32, i32
  }
  func.func @transform_5(%arg0: i32) -> (i32, i32) {
    %c0_i32 = arith.constant 0 : i32
    %c0_i32_0 = arith.constant 0 : i32
    %c0_i32_1 = arith.constant 0 : i32
    return %c0_i32, %c0_i32_0 : i32, i32
  }
  func.func @transform_6(%arg0: i32) -> (i32, i32) {
    %c0_i32 = arith.constant 0 : i32
    %c0_i32_0 = arith.constant 0 : i32
    %c0_i32_1 = arith.constant 0 : i32
    return %c0_i32, %c0_i32_0 : i32, i32
  }
  func.func @transform_7(%arg0: i32) -> (i32, i32) {
    %c0_i32 = arith.constant 0 : i32
    %c0_i32_0 = arith.constant 0 : i32
    %c0_i32_1 = arith.constant 0 : i32
    return %c0_i32, %c0_i32_0 : i32, i32
  }
  func.func @transform_8(%arg0: i32) -> (i32, i32) {
    %c0_i32 = arith.constant 0 : i32
    %c0_i32_0 = arith.constant 0 : i32
    return %arg0, %c0_i32 : i32, i32
  }
}

module attributes {stable_mosaic.version = 11 : i64} {
  func.func @_critic_kernel(%arg0: i32, %arg1: memref<8x32xf32, #tpu.memory_space<vmem>>, %arg2: memref<8x32xf32, #tpu.memory_space<vmem>>, %arg3: memref<32x32xf32, #tpu.memory_space<vmem>>, %arg4: memref<1x32xf32, #tpu.memory_space<vmem>>, %arg5: memref<32x32xf32, #tpu.memory_space<vmem>>, %arg6: memref<1x32xf32, #tpu.memory_space<vmem>>, %arg7: memref<32x1xf32, #tpu.memory_space<vmem>>, %arg8: memref<1x1xf32, #tpu.memory_space<vmem>>, %arg9: memref<8x1xf32, #tpu.memory_space<vmem>>) attributes {dimension_semantics = [#tpu.dimension_semantics<parallel>], iteration_bounds = array<i64: 1>, scalar_prefetch = 0 : i64, scratch_operands = 0 : i64, tpu.core_type = #tpu.core_type<tc>, window_params = [{transform_indices = @transform_0, window_bounds = array<i64: 8, 32>}, {transform_indices = @transform_1, window_bounds = array<i64: 8, 32>}, {pipeline_mode = #tpu.pipeline_mode<synchronous>, transform_indices = @transform_2, window_bounds = array<i64: 32, 32>}, {pipeline_mode = #tpu.pipeline_mode<synchronous>, transform_indices = @transform_3, window_bounds = array<i64: 1, 32>}, {pipeline_mode = #tpu.pipeline_mode<synchronous>, transform_indices = @transform_4, window_bounds = array<i64: 32, 32>}, {pipeline_mode = #tpu.pipeline_mode<synchronous>, transform_indices = @transform_5, window_bounds = array<i64: 1, 32>}, {pipeline_mode = #tpu.pipeline_mode<synchronous>, transform_indices = @transform_6, window_bounds = array<i64: 32, 1>}, {pipeline_mode = #tpu.pipeline_mode<synchronous>, transform_indices = @transform_7, window_bounds = array<i64: 1, 1>}, {transform_indices = @transform_8, window_bounds = array<i64: 8, 1>}]} {
    %c0 = arith.constant 0 : index
    %c0_0 = arith.constant 0 : index
    %0 = vector.load %arg1[%c0, %c0_0] : memref<8x32xf32, #tpu.memory_space<vmem>>, vector<8x32xf32>
    %c0_1 = arith.constant 0 : index
    %c0_2 = arith.constant 0 : index
    %1 = vector.load %arg2[%c0_1, %c0_2] : memref<8x32xf32, #tpu.memory_space<vmem>>, vector<8x32xf32>
    %2 = arith.mulf %0, %1 : vector<8x32xf32>
    %c0_3 = arith.constant 0 : index
    %c0_4 = arith.constant 0 : index
    %3 = vector.load %arg3[%c0_3, %c0_4] : memref<32x32xf32, #tpu.memory_space<vmem>>, vector<32x32xf32>
    %cst = arith.constant dense<0.000000e+00> : vector<8x32xf32>
    %4 = tpu.matmul %2, %3, %cst {dimension_numbers = #tpu.dot_dimension_numbers<[1], [0], [0], [1], [0, 0, 1, 1], [], []>} : vector<8x32xf32>, vector<32x32xf32>, vector<8x32xf32> -> vector<8x32xf32>
    %c0_5 = arith.constant 0 : index
    %c0_6 = arith.constant 0 : index
    %5 = vector.load %arg4[%c0_5, %c0_6] : memref<1x32xf32, #tpu.memory_space<vmem>>, vector<1x32xf32>
    %6 = vector.broadcast %5 : vector<1x32xf32> to vector<8x32xf32>
    %7 = arith.addf %4, %6 : vector<8x32xf32>
    %cst_7 = arith.constant 0.000000e+00 : f32
    %8 = vector.broadcast %cst_7 : f32 to vector<8x32xf32>
    %9 = arith.maximumf %7, %8 : vector<8x32xf32>
    %c0_8 = arith.constant 0 : index
    %c0_9 = arith.constant 0 : index
    %10 = vector.load %arg5[%c0_8, %c0_9] : memref<32x32xf32, #tpu.memory_space<vmem>>, vector<32x32xf32>
    %cst_10 = arith.constant dense<0.000000e+00> : vector<8x32xf32>
    %11 = tpu.matmul %9, %10, %cst_10 {dimension_numbers = #tpu.dot_dimension_numbers<[1], [0], [0], [1], [0, 0, 1, 1], [], []>} : vector<8x32xf32>, vector<32x32xf32>, vector<8x32xf32> -> vector<8x32xf32>
    %c0_11 = arith.constant 0 : index
    %c0_12 = arith.constant 0 : index
    %12 = vector.load %arg6[%c0_11, %c0_12] : memref<1x32xf32, #tpu.memory_space<vmem>>, vector<1x32xf32>
    %13 = vector.broadcast %12 : vector<1x32xf32> to vector<8x32xf32>
    %14 = arith.addf %11, %13 : vector<8x32xf32>
    %cst_13 = arith.constant 0.000000e+00 : f32
    %15 = vector.broadcast %cst_13 : f32 to vector<8x32xf32>
    %16 = arith.maximumf %14, %15 : vector<8x32xf32>
    %c0_14 = arith.constant 0 : index
    %c0_15 = arith.constant 0 : index
    %17 = vector.load %arg7[%c0_14, %c0_15] : memref<32x1xf32, #tpu.memory_space<vmem>>, vector<32x1xf32>
    %cst_16 = arith.constant dense<0.000000e+00> : vector<8x1xf32>
    %18 = tpu.matmul %16, %17, %cst_16 {dimension_numbers = #tpu.dot_dimension_numbers<[1], [0], [0], [1], [0, 0, 1, 1], [], []>} : vector<8x32xf32>, vector<32x1xf32>, vector<8x1xf32> -> vector<8x1xf32>
    %c0_17 = arith.constant 0 : index
    %c0_18 = arith.constant 0 : index
    %19 = vector.load %arg8[%c0_17, %c0_18] : memref<1x1xf32, #tpu.memory_space<vmem>>, vector<1x1xf32>
    %20 = vector.broadcast %19 : vector<1x1xf32> to vector<8x1xf32>
    %21 = arith.addf %18, %20 : vector<8x1xf32>
    %c0_19 = arith.constant 0 : index
    %c0_20 = arith.constant 0 : index
    %22 = vector.load %arg9[%c0_19, %c0_20] : memref<8x1xf32, #tpu.memory_space<vmem>>, vector<8x1xf32>
    tpu.vector_store %arg9[%c0_19, %c0_20], %21 {strides = array<i32>} : memref<8x1xf32, #tpu.memory_space<vmem>>, vector<8x1xf32>,
    return
  }
  func.func @transform_0(%arg0: i32) -> (i32, i32) {
    %c0_i32 = arith.constant 0 : i32
    %c0_i32_0 = arith.constant 0 : i32
    return %arg0, %c0_i32 : i32, i32
  }
  func.func @transform_1(%arg0: i32) -> (i32, i32) {
    %c0_i32 = arith.constant 0 : i32
    %c0_i32_0 = arith.constant 0 : i32
    return %arg0, %c0_i32 : i32, i32
  }
  func.func @transform_2(%arg0: i32) -> (i32, i32) {
    %c0_i32 = arith.constant 0 : i32
    %c0_i32_0 = arith.constant 0 : i32
    %c0_i32_1 = arith.constant 0 : i32
    return %c0_i32, %c0_i32_0 : i32, i32
  }
  func.func @transform_3(%arg0: i32) -> (i32, i32) {
    %c0_i32 = arith.constant 0 : i32
    %c0_i32_0 = arith.constant 0 : i32
    %c0_i32_1 = arith.constant 0 : i32
    return %c0_i32, %c0_i32_0 : i32, i32
  }
  func.func @transform_4(%arg0: i32) -> (i32, i32) {
    %c0_i32 = arith.constant 0 : i32
    %c0_i32_0 = arith.constant 0 : i32
    %c0_i32_1 = arith.constant 0 : i32
    return %c0_i32, %c0_i32_0 : i32, i32
  }
  func.func @transform_5(%arg0: i32) -> (i32, i32) {
    %c0_i32 = arith.constant 0 : i32
    %c0_i32_0 = arith.constant 0 : i32
    %c0_i32_1 = arith.constant 0 : i32
    return %c0_i32, %c0_i32_0 : i32, i32
  }
  func.func @transform_6(%arg0: i32) -> (i32, i32) {
    %c0_i32 = arith.constant 0 : i32
    %c0_i32_0 = arith.constant 0 : i32
    %c0_i32_1 = arith.constant 0 : i32
    return %c0_i32, %c0_i32_0 : i32, i32
  }
  func.func @transform_7(%arg0: i32) -> (i32, i32) {
    %c0_i32 = arith.constant 0 : i32
    %c0_i32_0 = arith.constant 0 : i32
    %c0_i32_1 = arith.constant 0 : i32
    return %c0_i32, %c0_i32_0 : i32, i32
  }
  func.func @transform_8(%arg0: i32) -> (i32, i32) {
    %c0_i32 = arith.constant 0 : i32
    %c0_i32_0 = arith.constant 0 : i32
    return %arg0, %c0_i32 : i32, i32
  }
}

</mosaic_0001>

<llo_original>
// kernel: tpu_custom_call.1
$region0: #{tpu_custom_call.1}
  #allocation0 [shape = 'u32[]', space=smem, size = 0x4, offset = 0x4, fixed_abs, tag = 'smem constant byte address 0x4 - core index']
  #allocation1 [shape = 'u32[144,128]{1,0:T(1,128)}', space=vmem, size = 0x12000, scoped, tag = 'internal scratch']
  #allocation2 [shape = 'f32[1,1]{1,0:T(1,128)S(1)}', space=vmem, size = 0x200, scoped, tag = 'scoped memory for tpu_custom_call.1']
  %s0 = inlined_call_operand.vmem [shape: f32[8,32], index: 0, kind: input, shape index: {}]
  %s1 = inlined_call_operand.hbm [shape: f32[8,32], index: 1, kind: input, shape index: {}]
  %s2 = inlined_call_operand.vmem [shape: f32[32,32], index: 2, kind: input, shape index: {}]
  %s3 = inlined_call_operand.vmem [shape: f32[1,32], index: 3, kind: input, shape index: {}]
  %s4 = inlined_call_operand.hbm [shape: f32[32,32], index: 4, kind: input, shape index: {}]
  %s5 = inlined_call_operand.vmem [shape: f32[1,32], index: 5, kind: input, shape index: {}]
  %s6 = inlined_call_operand.vmem [shape: f32[32,1], index: 6, kind: input, shape index: {}]
  %s7 = inlined_call_operand.<no memory space> [shape: f32[1,1], index: 7, kind: input, shape index: {}]
  %s8 = inlined_call_operand.vmem [shape: f32[8,1], index: 8, kind: output, shape index: {}]
  %s9 = sld [smem:[#allocation0]]
  $region50: #{tpu_custom_call.1} parent=0
    _
  %s11 = ssub.s32 1, %s9
  %s12 = scalar_select 0, %s11, %s9
  %v13 = vstv %s7
  %14 = vst [vmem:[#allocation2] sm:$0x1] %v13
  $region1: #{tpu_custom_call.1} parent=0
    #allocation3 [shape = 'u8[4096]{0}', space=vmem, size = 0x1000, scoped, tag = 'input window, operand 1, single buffered']
    #allocation4 [shape = 's32[1]{0}', space=sflag, size = 0x4, scoped, tag = 'scoped memory for tpu_custom_call.1']
    #allocation5 [shape = 'u8[16384]{0}', space=vmem, size = 0x4000, scoped, tag = 'input window, operand 4, single buffered']
    #allocation6 [shape = 's32[1]{0}', space=sflag, size = 0x4, scoped, tag = 'scoped memory for tpu_custom_call.1']
    %15 = vsyncpa [#allocation4], 0
    %16 = vsyncpa [#allocation6], 0
    // Predicated region
    $region2: #{tpu_custom_call.1} parent=1 // pred_check
      _
    $region3: #{tpu_custom_call.1} parent=1 // pred_check_branch
      %18 = sbr.rel (0) target = $region5
    $region4: #{tpu_custom_call.1} parent=1 // pred_region
      _
    $region5: #{tpu_custom_call.1} parent=1 // pred_fallthru
      _
    // Predicated region
    $region6: #{tpu_custom_call.1} parent=1 // pred_check
      _
    $region7: #{tpu_custom_call.1} parent=1 // pred_check_branch
      %20 = sbr.rel (0) target = $region9
    $region8: #{tpu_custom_call.1} parent=1 // pred_region
      %s22 = ssub.s32 128, 128
      %23 = vsyncadd [#allocation4], %s22
      %s25 = sshll.u32 [#allocation3], 4
      %s26 = int_to_ptr.vmem [resolvable:$true] %s25
      %28 = dma.hbm_to_vmem [thread:$0]  %s1, 128, %s26, [#allocation4]
    $region9: #{tpu_custom_call.1} parent=1 // pred_fallthru
      _
    // Predicated region
    $region10: #{tpu_custom_call.1} parent=1 // pred_check
      _
    $region11: #{tpu_custom_call.1} parent=1 // pred_check_branch
      %30 = sbr.rel (0) target = $region13
    $region12: #{tpu_custom_call.1} parent=1 // pred_region
      _
    $region13: #{tpu_custom_call.1} parent=1 // pred_fallthru
      _
    // Predicated region
    $region14: #{tpu_custom_call.1} parent=1 // pred_check
      _
    $region15: #{tpu_custom_call.1} parent=1 // pred_check_branch
      %32 = sbr.rel (0) target = $region17
    $region16: #{tpu_custom_call.1} parent=1 // pred_region
      _
    $region17: #{tpu_custom_call.1} parent=1 // pred_fallthru
      _
    // Predicated region
    $region18: #{tpu_custom_call.1} parent=1 // pred_check
      _
    $region19: #{tpu_custom_call.1} parent=1 // pred_check_branch
      %34 = sbr.rel (0) target = $region21
    $region20: #{tpu_custom_call.1} parent=1 // pred_region
      %s36 = ssub.s32 512, 512
      %37 = vsyncadd [#allocation6], %s36
      %s38 = sshll.u32 [#allocation5], 4
      %s39 = int_to_ptr.vmem [resolvable:$true] %s38
      %44 = dma.hbm_to_vmem [thread:$0]  %s4, 512, %s39, [#allocation6], 128, 128, 8
    $region21: #{tpu_custom_call.1} parent=1 // pred_fallthru
      _
    // Predicated region
    $region22: #{tpu_custom_call.1} parent=1 // pred_check
      _
    $region23: #{tpu_custom_call.1} parent=1 // pred_check_branch
      %46 = sbr.rel (0) target = $region25
    $region24: #{tpu_custom_call.1} parent=1 // pred_region
      _
    $region25: #{tpu_custom_call.1} parent=1 // pred_fallthru
      _
    // Predicated region
    $region26: #{tpu_custom_call.1} parent=1 // pred_check
      _
    $region27: #{tpu_custom_call.1} parent=1 // pred_check_branch
      %48 = sbr.rel (0) target = $region29
    $region28: #{tpu_custom_call.1} parent=1 // pred_region
      _
    $region29: #{tpu_custom_call.1} parent=1 // pred_fallthru
      _
    // Predicated region
    $region30: #{tpu_custom_call.1} parent=1 // pred_check
      _
    $region31: #{tpu_custom_call.1} parent=1 // pred_check_branch
      %50 = sbr.rel (0) target = $region33
    $region32: #{tpu_custom_call.1} parent=1 // pred_region
      _
    $region33: #{tpu_custom_call.1} parent=1 // pred_fallthru
      _
    // Predicated region
    $region34: #{tpu_custom_call.1} parent=1 // pred_check
      _
    $region35: #{tpu_custom_call.1} parent=1 // pred_check_branch
      %52 = sbr.rel (0) target = $region37
    $region36: #{tpu_custom_call.1} parent=1 // pred_region
      %53 = dma.done [#allocation4], 128
    $region37: #{tpu_custom_call.1} parent=1 // pred_fallthru
      _
    // Predicated region
    $region38: #{tpu_custom_call.1} parent=1 // pred_check
      _
    $region39: #{tpu_custom_call.1} parent=1 // pred_check_branch
      %55 = sbr.rel (0) target = $region41
    $region40: #{tpu_custom_call.1} parent=1 // pred_region
      %56 = dma.done [#allocation6], 512
    $region41: #{tpu_custom_call.1} parent=1 // pred_fallthru
      _
    %v57 = vld [vmem:[%s0] sm:$0xff]
    %v58 = vld [vmem:[#allocation3] sm:$0xff]
    %v59 = vmul.f32 %v57, %v58
    %v60 = vld [vmem:[%s2] sm:$0xff]
    %v61 = vld [vmem:[%s2 + $0x8] sm:$0xff]
    %v62 = vld [vmem:[%s2 + $0x10] sm:$0xff]
    %v63 = vld [vmem:[%s2 + $0x18] sm:$0xff]
    %v64 = vld [vmem:[%s3] sm:$0x1]
    %v66 = vlaneseq
    %v67 = vshrl.u32 %v66, 7
    %v68 = vsub.s32 0, %v67
    %v69 = vrot.slane %v64, %v68
    %vm71 = vcmask 261120
    %v73 = vsel %vm71, %v59, 0
    %75 = vmatprep.subr.mxu0 0.0
    %76 = vmatpush1.msra.mxu0 %v60
    %77 = vmatprep.subr.mxu0 0.0
    %78 = vmatpush1.msra.mxu0 %v61
    %79 = vmatprep.subr.mxu0 0.0
    %80 = vmatpush1.msra.mxu0 %v62
    %81 = vmatprep.subr.mxu0 0.0
    %82 = vmatpush1.msra.mxu0 %v63
    %83 = vmatprep.subr.mxu0 0.0
    %84 = vmatpush1.msra.mxu0 0.0
    %85 = vmatprep.subr.mxu0 0.0
    %86 = vmatpush1.msra.mxu0 0.0
    %87 = vmatprep.subr.mxu0 0.0
    %88 = vmatpush1.msra.mxu0 0.0
    %89 = vmatprep.subr.mxu0 0.0
    %90 = vmatpush1.msra.mxu0 0.0
    %91 = vmatprep.subr.mxu0 0.0
    %92 = vmatpush1.msra.mxu0 0.0
    %93 = vmatprep.subr.mxu0 0.0
    %94 = vmatpush1.msra.mxu0 0.0
    %95 = vmatprep.subr.mxu0 0.0
    %96 = vmatpush1.msra.mxu0 0.0
    %97 = vmatprep.subr.mxu0 0.0
    %98 = vmatpush1.msra.mxu0 0.0
    %99 = vmatprep.subr.mxu0 0.0
    %100 = vmatpush1.msra.mxu0 0.0
    %101 = vmatprep.subr.mxu0 0.0
    %102 = vmatpush1.msra.mxu0 0.0
    %103 = vmatprep.subr.mxu0 0.0
    %104 = vmatpush1.msra.mxu0 0.0
    %105 = vmatprep.subr.mxu0 0.0
    %106 = vmatpush1.msra.mxu0 0.0
    %107 = vmatprep.subr.mxu0 0.0
    %108 = vmatpush1.msra.mxu0 0.0
    %109 = vmatprep.subr.mxu0 0.0
    %110 = vmatpush1.msra.mxu0 0.0
    %111 = vmatprep.subr.mxu0 0.0
    %112 = vmatpush1.msra.mxu0 0.0
    %113 = vmatprep.subr.mxu0 0.0
    %114 = vmatpush1.msra.mxu0 0.0
    %115 = vmatprep.subr.mxu0 0.0
    %116 = vmatpush1.msra.mxu0 0.0
    %117 = vmatprep.subr.mxu0 0.0
    %118 = vmatpush1.msra.mxu0 0.0
    %119 = vmatprep.subr.mxu0 0.0
    %120 = vmatpush1.msra.mxu0 0.0
    %121 = vmatprep.subr.mxu0 0.0
    %122 = vmatpush1.msra.mxu0 0.0
    %123 = vmatprep.subr.mxu0 0.0
    %124 = vmatpush1.msra.mxu0 0.0
    %125 = vmatprep.subr.mxu0 0.0
    %126 = vmatpush1.msra.mxu0 0.0
    %127 = vmatprep.subr.mxu0 0.0
    %128 = vmatpush1.msra.mxu0 0.0
    %129 = vmatprep.subr.mxu0 0.0
    %130 = vmatpush1.msra.mxu0 0.0
    %131 = vmatprep.subr.mxu0 0.0
    %132 = vmatpush1.msra.mxu0 0.0
    %133 = vmatprep.subr.mxu0 0.0
    %134 = vmatpush1.msra.mxu0 0.0
    %135 = vmatprep.subr.mxu0 0.0
    %136 = vmatpush1.msra.mxu0 0.0
    %137 = vmatprep.subr.mxu0 0.0
    %138 = vmatpush1.msra.mxu0 0.0
    %139 = vmatprep.mubr.f32.mxu0 0.0
    %140 = vmatmul.mubr.f32.gmra.mrb[0].mxu0 %v73
    %v141 = vpop.f32.mrb[0].mxu0
    %v142 = vadd.f32 %v69, %v141
    %v143 = vpop.f32.mrb[0].mxu0
    %144 = vdwg.mxu0
    %v145 = vmax.f32 %v142, 0.0
    %v146 = vld [vmem:[#allocation5] sm:$0xff]
    %v147 = vld [vmem:[#allocation5 + $0x8] sm:$0xff]
    %v148 = vld [vmem:[#allocation5 + $0x10] sm:$0xff]
    %v149 = vld [vmem:[#allocation5 + $0x18] sm:$0xff]
    %v150 = vld [vmem:[%s5] sm:$0x1]
    %v152 = vlaneseq
    %v153 = vshrl.u32 %v152, 7
    %v154 = vsub.s32 0, %v153
    %v155 = vrot.slane %v150, %v154
    %v158 = vsel %vm71, %v145, 0
    %160 = vmatprep.subr.mxu0 0.0
    %161 = vmatpush1.msra.mxu0 %v146
    %162 = vmatprep.subr.mxu0 0.0
    %163 = vmatpush1.msra.mxu0 %v147
    %164 = vmatprep.subr.mxu0 0.0
    %165 = vmatpush1.msra.mxu0 %v148
    %166 = vmatprep.subr.mxu0 0.0
    %167 = vmatpush1.msra.mxu0 %v149
    %168 = vmatprep.subr.mxu0 0.0
    %169 = vmatpush1.msra.mxu0 0.0
    %170 = vmatprep.subr.mxu0 0.0
    %171 = vmatpush1.msra.mxu0 0.0
    %172 = vmatprep.subr.mxu0 0.0
    %173 = vmatpush1.msra.mxu0 0.0
    %174 = vmatprep.subr.mxu0 0.0
    %175 = vmatpush1.msra.mxu0 0.0
    %176 = vmatprep.subr.mxu0 0.0
    %177 = vmatpush1.msra.mxu0 0.0
    %178 = vmatprep.subr.mxu0 0.0
    %179 = vmatpush1.msra.mxu0 0.0
    %180 = vmatprep.subr.mxu0 0.0
    %181 = vmatpush1.msra.mxu0 0.0
    %182 = vmatprep.subr.mxu0 0.0
    %183 = vmatpush1.msra.mxu0 0.0
    %184 = vmatprep.subr.mxu0 0.0
    %185 = vmatpush1.msra.mxu0 0.0
    %186 = vmatprep.subr.mxu0 0.0
    %187 = vmatpush1.msra.mxu0 0.0
    %188 = vmatprep.subr.mxu0 0.0
    %189 = vmatpush1.msra.mxu0 0.0
    %190 = vmatprep.subr.mxu0 0.0
    %191 = vmatpush1.msra.mxu0 0.0
    %192 = vmatprep.subr.mxu0 0.0
    %193 = vmatpush1.msra.mxu0 0.0
    %194 = vmatprep.subr.mxu0 0.0
    %195 = vmatpush1.msra.mxu0 0.0
    %196 = vmatprep.subr.mxu0 0.0
    %197 = vmatpush1.msra.mxu0 0.0
    %198 = vmatprep.subr.mxu0 0.0
    %199 = vmatpush1.msra.mxu0 0.0
    %200 = vmatprep.subr.mxu0 0.0
    %201 = vmatpush1.msra.mxu0 0.0
    %202 = vmatprep.subr.mxu0 0.0
    %203 = vmatpush1.msra.mxu0 0.0
    %204 = vmatprep.subr.mxu0 0.0
    %205 = vmatpush1.msra.mxu0 0.0
    %206 = vmatprep.subr.mxu0 0.0
    %207 = vmatpush1.msra.mxu0 0.0
    %208 = vmatprep.subr.mxu0 0.0
    %209 = vmatpush1.msra.mxu0 0.0
    %210 = vmatprep.subr.mxu0 0.0
    %211 = vmatpush1.msra.mxu0 0.0
    %212 = vmatprep.subr.mxu0 0.0
    %213 = vmatpush1.msra.mxu0 0.0
    %214 = vmatprep.subr.mxu0 0.0
    %215 = vmatpush1.msra.mxu0 0.0
    %216 = vmatprep.subr.mxu0 0.0
    %217 = vmatpush1.msra.mxu0 0.0
    %218 = vmatprep.subr.mxu0 0.0
    %219 = vmatpush1.msra.mxu0 0.0
    %220 = vmatprep.subr.mxu0 0.0
    %221 = vmatpush1.msra.mxu0 0.0
    %222 = vmatprep.subr.mxu0 0.0
    %223 = vmatpush1.msra.mxu0 0.0
    %224 = vmatprep.mubr.f32.mxu0 0.0
    %225 = vmatmul.mubr.f32.gmra.mrb[0].mxu0 %v158
    %v226 = vpop.f32.mrb[0].mxu0
    %v227 = vadd.f32 %v155, %v226
    %v228 = vpop.f32.mrb[0].mxu0
    %229 = vdwg.mxu0
    %v230 = vmax.f32 %v227, 0.0
    %v231 = vld [vmem:[%s6] sm:$0xff]
    %v232 = vld [vmem:[%s6 + $0x8] sm:$0xff]
    %v233 = vld [vmem:[%s6 + $0x10] sm:$0xff]
    %v234 = vld [vmem:[%s6 + $0x18] sm:$0xff]
    %v235 = vld [vmem:[#allocation2] sm:$0x1]
    %v237 = vlaneseq
    %v238 = vshrl.u32 %v237, 7
    %v239 = vsub.s32 0, %v238
    %v240 = vrot.slane %v235, %v239
    %v243 = vsel %vm71, %v230, 0
    %245 = vmatprep.subr.mxu0 0.0
    %246 = vmatpush1.msra.mxu0 %v231
    %247 = vmatprep.subr.mxu0 0.0
    %248 = vmatpush1.msra.mxu0 %v232
    %249 = vmatprep.subr.mxu0 0.0
    %250 = vmatpush1.msra.mxu0 %v233
    %251 = vmatprep.subr.mxu0 0.0
    %252 = vmatpush1.msra.mxu0 %v234
    %253 = vmatprep.subr.mxu0 0.0
    %254 = vmatpush1.msra.mxu0 0.0
    %255 = vmatprep.subr.mxu0 0.0
    %256 = vmatpush1.msra.mxu0 0.0
    %257 = vmatprep.subr.mxu0 0.0
    %258 = vmatpush1.msra.mxu0 0.0
    %259 = vmatprep.subr.mxu0 0.0
    %260 = vmatpush1.msra.mxu0 0.0
    %261 = vmatprep.subr.mxu0 0.0
    %262 = vmatpush1.msra.mxu0 0.0
    %263 = vmatprep.subr.mxu0 0.0
    %264 = vmatpush1.msra.mxu0 0.0
    %265 = vmatprep.subr.mxu0 0.0
    %266 = vmatpush1.msra.mxu0 0.0
    %267 = vmatprep.subr.mxu0 0.0
    %268 = vmatpush1.msra.mxu0 0.0
    %269 = vmatprep.subr.mxu0 0.0
    %270 = vmatpush1.msra.mxu0 0.0
    %271 = vmatprep.subr.mxu0 0.0
    %272 = vmatpush1.msra.mxu0 0.0
    %273 = vmatprep.subr.mxu0 0.0
    %274 = vmatpush1.msra.mxu0 0.0
    %275 = vmatprep.subr.mxu0 0.0
    %276 = vmatpush1.msra.mxu0 0.0
    %277 = vmatprep.subr.mxu0 0.0
    %278 = vmatpush1.msra.mxu0 0.0
    %279 = vmatprep.subr.mxu0 0.0
    %280 = vmatpush1.msra.mxu0 0.0
    %281 = vmatprep.subr.mxu0 0.0
    %282 = vmatpush1.msra.mxu0 0.0
    %283 = vmatprep.subr.mxu0 0.0
    %284 = vmatpush1.msra.mxu0 0.0
    %285 = vmatprep.subr.mxu0 0.0
    %286 = vmatpush1.msra.mxu0 0.0
    %287 = vmatprep.subr.mxu0 0.0
    %288 = vmatpush1.msra.mxu0 0.0
    %289 = vmatprep.subr.mxu0 0.0
    %290 = vmatpush1.msra.mxu0 0.0
    %291 = vmatprep.subr.mxu0 0.0
    %292 = vmatpush1.msra.mxu0 0.0
    %293 = vmatprep.subr.mxu0 0.0
    %294 = vmatpush1.msra.mxu0 0.0
    %295 = vmatprep.subr.mxu0 0.0
    %296 = vmatpush1.msra.mxu0 0.0
    %297 = vmatprep.subr.mxu0 0.0
    %298 = vmatpush1.msra.mxu0 0.0
    %299 = vmatprep.subr.mxu0 0.0
    %300 = vmatpush1.msra.mxu0 0.0
    %301 = vmatprep.subr.mxu0 0.0
    %302 = vmatpush1.msra.mxu0 0.0
    %303 = vmatprep.subr.mxu0 0.0
    %304 = vmatpush1.msra.mxu0 0.0
    %305 = vmatprep.subr.mxu0 0.0
    %306 = vmatpush1.msra.mxu0 0.0
    %307 = vmatprep.subr.mxu0 0.0
    %308 = vmatpush1.msra.mxu0 0.0
    %309 = vmatprep.mubr.f32.mxu0 0.0
    %310 = vmatmul.mubr.f32.gmra.mrb[0].mxu0 %v243
    %v311 = vpop.f32.mrb[0].mxu0
    %v312 = vadd.f32 %v240, %v311
    %v313 = vpop.f32.mrb[0].mxu0
    %314 = vdwg.mxu0
    %vm315 = vcmask 7168
    %316 = vst.msk [vmem:[%s8] sm:$0xff] %vm315, %v312
    // Predicated region
    $region42: #{tpu_custom_call.1} parent=1 // pred_check
      _
    $region43: #{tpu_custom_call.1} parent=1 // pred_check_branch
      %318 = sbr.rel (0) target = $region45
    $region44: #{tpu_custom_call.1} parent=1 // pred_region
      _
    $region45: #{tpu_custom_call.1} parent=1 // pred_fallthru
      _
    // Predicated region
    $region46: #{tpu_custom_call.1} parent=1 // pred_check
      _
    $region47: #{tpu_custom_call.1} parent=1 // pred_check_branch
      %320 = sbr.rel (0) target = $region49
    $region48: #{tpu_custom_call.1} parent=1 // pred_region
      _
    $region49: #{tpu_custom_call.1} parent=1 // pred_fallthru
      _
    %321 = vsyncpa [#allocation4], 1
    %322 = vsyncpa [#allocation6], 1

// kernel: tpu_custom_call.1
$region0: #{tpu_custom_call.1}
  #allocation0 [shape = 'u32[]', space=smem, size = 0x4, offset = 0x4, fixed_abs, tag = 'smem constant byte address 0x4 - core index']
  #allocation1 [shape = 'u32[144,128]{1,0:T(1,128)}', space=vmem, size = 0x12000, scoped, tag = 'internal scratch']
  #allocation2 [shape = 'f32[1,1]{1,0:T(1,128)S(1)}', space=vmem, size = 0x200, scoped, tag = 'scoped memory for tpu_custom_call.1']
  %s0 = inlined_call_operand.vmem [shape: f32[8,32], index: 0, kind: input, shape index: {}]
  %s1 = inlined_call_operand.hbm [shape: f32[8,32], index: 1, kind: input, shape index: {}]
  %s2 = inlined_call_operand.vmem [shape: f32[32,32], index: 2, kind: input, shape index: {}]
  %s3 = inlined_call_operand.vmem [shape: f32[1,32], index: 3, kind: input, shape index: {}]
  %s4 = inlined_call_operand.hbm [shape: f32[32,32], index: 4, kind: input, shape index: {}]
  %s5 = inlined_call_operand.vmem [shape: f32[1,32], index: 5, kind: input, shape index: {}]
  %s6 = inlined_call_operand.vmem [shape: f32[32,1], index: 6, kind: input, shape index: {}]
  %s7 = inlined_call_operand.<no memory space> [shape: f32[1,1], index: 7, kind: input, shape index: {}]
  %s8 = inlined_call_operand.vmem [shape: f32[8,1], index: 8, kind: output, shape index: {}]
  %s9 = sld [smem:[#allocation0]]
  $region50: #{tpu_custom_call.1} parent=0
    _
  %s11 = ssub.s32 1, %s9
  %s12 = scalar_select 0, %s11, %s9
  %v13 = vstv %s7
  %14 = vst [vmem:[#allocation2] sm:$0x1] %v13
  $region1: #{tpu_custom_call.1} parent=0
    #allocation3 [shape = 'u8[4096]{0}', space=vmem, size = 0x1000, scoped, tag = 'input window, operand 1, single buffered']
    #allocation4 [shape = 's32[1]{0}', space=sflag, size = 0x4, scoped, tag = 'scoped memory for tpu_custom_call.1']
    #allocation5 [shape = 'u8[16384]{0}', space=vmem, size = 0x4000, scoped, tag = 'input window, operand 4, single buffered']
    #allocation6 [shape = 's32[1]{0}', space=sflag, size = 0x4, scoped, tag = 'scoped memory for tpu_custom_call.1']
    %15 = vsyncpa [#allocation4], 0
    %16 = vsyncpa [#allocation6], 0
    // Predicated region
    $region2: #{tpu_custom_call.1} parent=1 // pred_check
      _
    $region3: #{tpu_custom_call.1} parent=1 // pred_check_branch
      %18 = sbr.rel (0) target = $region5
    $region4: #{tpu_custom_call.1} parent=1 // pred_region
      _
    $region5: #{tpu_custom_call.1} parent=1 // pred_fallthru
      _
    // Predicated region
    $region6: #{tpu_custom_call.1} parent=1 // pred_check
      _
    $region7: #{tpu_custom_call.1} parent=1 // pred_check_branch
      %20 = sbr.rel (0) target = $region9
    $region8: #{tpu_custom_call.1} parent=1 // pred_region
      %s22 = ssub.s32 128, 128
      %23 = vsyncadd [#allocation4], %s22
      %s25 = sshll.u32 [#allocation3], 4
      %s26 = int_to_ptr.vmem [resolvable:$true] %s25
      %28 = dma.hbm_to_vmem [thread:$0]  %s1, 128, %s26, [#allocation4]
    $region9: #{tpu_custom_call.1} parent=1 // pred_fallthru
      _
    // Predicated region
    $region10: #{tpu_custom_call.1} parent=1 // pred_check
      _
    $region11: #{tpu_custom_call.1} parent=1 // pred_check_branch
      %30 = sbr.rel (0) target = $region13
    $region12: #{tpu_custom_call.1} parent=1 // pred_region
      _
    $region13: #{tpu_custom_call.1} parent=1 // pred_fallthru
      _
    // Predicated region
    $region14: #{tpu_custom_call.1} parent=1 // pred_check
      _
    $region15: #{tpu_custom_call.1} parent=1 // pred_check_branch
      %32 = sbr.rel (0) target = $region17
    $region16: #{tpu_custom_call.1} parent=1 // pred_region
      _
    $region17: #{tpu_custom_call.1} parent=1 // pred_fallthru
      _
    // Predicated region
    $region18: #{tpu_custom_call.1} parent=1 // pred_check
      _
    $region19: #{tpu_custom_call.1} parent=1 // pred_check_branch
      %34 = sbr.rel (0) target = $region21
    $region20: #{tpu_custom_call.1} parent=1 // pred_region
      %s36 = ssub.s32 512, 512
      %37 = vsyncadd [#allocation6], %s36
      %s38 = sshll.u32 [#allocation5], 4
      %s39 = int_to_ptr.vmem [resolvable:$true] %s38
      %44 = dma.hbm_to_vmem [thread:$0]  %s4, 512, %s39, [#allocation6], 128, 128, 8
    $region21: #{tpu_custom_call.1} parent=1 // pred_fallthru
      _
    // Predicated region
    $region22: #{tpu_custom_call.1} parent=1 // pred_check
      _
    $region23: #{tpu_custom_call.1} parent=1 // pred_check_branch
      %46 = sbr.rel (0) target = $region25
    $region24: #{tpu_custom_call.1} parent=1 // pred_region
      _
    $region25: #{tpu_custom_call.1} parent=1 // pred_fallthru
      _
    // Predicated region
    $region26: #{tpu_custom_call.1} parent=1 // pred_check
      _
    $region27: #{tpu_custom_call.1} parent=1 // pred_check_branch
      %48 = sbr.rel (0) target = $region29
    $region28: #{tpu_custom_call.1} parent=1 // pred_region
      _
    $region29: #{tpu_custom_call.1} parent=1 // pred_fallthru
      _
    // Predicated region
    $region30: #{tpu_custom_call.1} parent=1 // pred_check
      _
    $region31: #{tpu_custom_call.1} parent=1 // pred_check_branch
      %50 = sbr.rel (0) target = $region33
    $region32: #{tpu_custom_call.1} parent=1 // pred_region
      _
    $region33: #{tpu_custom_call.1} parent=1 // pred_fallthru
      _
    // Predicated region
    $region34: #{tpu_custom_call.1} parent=1 // pred_check
      _
    $region35: #{tpu_custom_call.1} parent=1 // pred_check_branch
      %52 = sbr.rel (0) target = $region37
    $region36: #{tpu_custom_call.1} parent=1 // pred_region
      %53 = dma.done [#allocation4], 128
    $region37: #{tpu_custom_call.1} parent=1 // pred_fallthru
      _
    // Predicated region
    $region38: #{tpu_custom_call.1} parent=1 // pred_check
      _
    $region39: #{tpu_custom_call.1} parent=1 // pred_check_branch
      %55 = sbr.rel (0) target = $region41
    $region40: #{tpu_custom_call.1} parent=1 // pred_region
      %56 = dma.done [#allocation6], 512
    $region41: #{tpu_custom_call.1} parent=1 // pred_fallthru
      _
    %v57 = vld [vmem:[%s0] sm:$0xff]
    %v58 = vld [vmem:[#allocation3] sm:$0xff]
    %v59 = vmul.f32 %v57, %v58
    %v60 = vld [vmem:[%s2] sm:$0xff]
    %v61 = vld [vmem:[%s2 + $0x8] sm:$0xff]
    %v62 = vld [vmem:[%s2 + $0x10] sm:$0xff]
    %v63 = vld [vmem:[%s2 + $0x18] sm:$0xff]
    %v64 = vld [vmem:[%s3] sm:$0x1]
    %v66 = vlaneseq
    %v67 = vshrl.u32 %v66, 7
    %v68 = vsub.s32 0, %v67
    %v69 = vrot.slane %v64, %v68
    %vm71 = vcmask 261120
    %v73 = vsel %vm71, %v59, 0
    %75 = vmatprep.subr.mxu0 0.0
    %76 = vmatpush1.msra.mxu0 %v60
    %77 = vmatprep.subr.mxu0 0.0
    %78 = vmatpush1.msra.mxu0 %v61
    %79 = vmatprep.subr.mxu0 0.0
    %80 = vmatpush1.msra.mxu0 %v62
    %81 = vmatprep.subr.mxu0 0.0
    %82 = vmatpush1.msra.mxu0 %v63
    %83 = vmatprep.subr.mxu0 0.0
    %84 = vmatpush1.msra.mxu0 0.0
    %85 = vmatprep.subr.mxu0 0.0
    %86 = vmatpush1.msra.mxu0 0.0
    %87 = vmatprep.subr.mxu0 0.0
    %88 = vmatpush1.msra.mxu0 0.0
    %89 = vmatprep.subr.mxu0 0.0
    %90 = vmatpush1.msra.mxu0 0.0
    %91 = vmatprep.subr.mxu0 0.0
    %92 = vmatpush1.msra.mxu0 0.0
    %93 = vmatprep.subr.mxu0 0.0
    %94 = vmatpush1.msra.mxu0 0.0
    %95 = vmatprep.subr.mxu0 0.0
    %96 = vmatpush1.msra.mxu0 0.0
    %97 = vmatprep.subr.mxu0 0.0
    %98 = vmatpush1.msra.mxu0 0.0
    %99 = vmatprep.subr.mxu0 0.0
    %100 = vmatpush1.msra.mxu0 0.0
    %101 = vmatprep.subr.mxu0 0.0
    %102 = vmatpush1.msra.mxu0 0.0
    %103 = vmatprep.subr.mxu0 0.0
    %104 = vmatpush1.msra.mxu0 0.0
    %105 = vmatprep.subr.mxu0 0.0
    %106 = vmatpush1.msra.mxu0 0.0
    %107 = vmatprep.subr.mxu0 0.0
    %108 = vmatpush1.msra.mxu0 0.0
    %109 = vmatprep.subr.mxu0 0.0
    %110 = vmatpush1.msra.mxu0 0.0
    %111 = vmatprep.subr.mxu0 0.0
    %112 = vmatpush1.msra.mxu0 0.0
    %113 = vmatprep.subr.mxu0 0.0
    %114 = vmatpush1.msra.mxu0 0.0
    %115 = vmatprep.subr.mxu0 0.0
    %116 = vmatpush1.msra.mxu0 0.0
    %117 = vmatprep.subr.mxu0 0.0
    %118 = vmatpush1.msra.mxu0 0.0
    %119 = vmatprep.subr.mxu0 0.0
    %120 = vmatpush1.msra.mxu0 0.0
    %121 = vmatprep.subr.mxu0 0.0
    %122 = vmatpush1.msra.mxu0 0.0
    %123 = vmatprep.subr.mxu0 0.0
    %124 = vmatpush1.msra.mxu0 0.0
    %125 = vmatprep.subr.mxu0 0.0
    %126 = vmatpush1.msra.mxu0 0.0
    %127 = vmatprep.subr.mxu0 0.0
    %128 = vmatpush1.msra.mxu0 0.0
    %129 = vmatprep.subr.mxu0 0.0
    %130 = vmatpush1.msra.mxu0 0.0
    %131 = vmatprep.subr.mxu0 0.0
    %132 = vmatpush1.msra.mxu0 0.0
    %133 = vmatprep.subr.mxu0 0.0
    %134 = vmatpush1.msra.mxu0 0.0
    %135 = vmatprep.subr.mxu0 0.0
    %136 = vmatpush1.msra.mxu0 0.0
    %137 = vmatprep.subr.mxu0 0.0
    %138 = vmatpush1.msra.mxu0 0.0
    %139 = vmatprep.mubr.f32.mxu0 0.0
    %140 = vmatmul.mubr.f32.gmra.mrb[0].mxu0 %v73
    %v141 = vpop.f32.mrb[0].mxu0
    %v142 = vadd.f32 %v69, %v141
    %v143 = vpop.f32.mrb[0].mxu0
    %144 = vdwg.mxu0
    %v145 = vmax.f32 %v142, 0.0
    %v146 = vld [vmem:[#allocation5] sm:$0xff]
    %v147 = vld [vmem:[#allocation5 + $0x8] sm:$0xff]
    %v148 = vld [vmem:[#allocation5 + $0x10] sm:$0xff]
    %v149 = vld [vmem:[#allocation5 + $0x18] sm:$0xff]
    %v150 = vld [vmem:[%s5] sm:$0x1]
    %v152 = vlaneseq
    %v153 = vshrl.u32 %v152, 7
    %v154 = vsub.s32 0, %v153
    %v155 = vrot.slane %v150, %v154
    %v158 = vsel %vm71, %v145, 0
    %160 = vmatprep.subr.mxu0 0.0
    %161 = vmatpush1.msra.mxu0 %v146
    %162 = vmatprep.subr.mxu0 0.0
    %163 = vmatpush1.msra.mxu0 %v147
    %164 = vmatprep.subr.mxu0 0.0
    %165 = vmatpush1.msra.mxu0 %v148
    %166 = vmatprep.subr.mxu0 0.0
    %167 = vmatpush1.msra.mxu0 %v149
    %168 = vmatprep.subr.mxu0 0.0
    %169 = vmatpush1.msra.mxu0 0.0
    %170 = vmatprep.subr.mxu0 0.0
    %171 = vmatpush1.msra.mxu0 0.0
    %172 = vmatprep.subr.mxu0 0.0
    %173 = vmatpush1.msra.mxu0 0.0
    %174 = vmatprep.subr.mxu0 0.0
    %175 = vmatpush1.msra.mxu0 0.0
    %176 = vmatprep.subr.mxu0 0.0
    %177 = vmatpush1.msra.mxu0 0.0
    %178 = vmatprep.subr.mxu0 0.0
    %179 = vmatpush1.msra.mxu0 0.0
    %180 = vmatprep.subr.mxu0 0.0
    %181 = vmatpush1.msra.mxu0 0.0
    %182 = vmatprep.subr.mxu0 0.0
    %183 = vmatpush1.msra.mxu0 0.0
    %184 = vmatprep.subr.mxu0 0.0
    %185 = vmatpush1.msra.mxu0 0.0
    %186 = vmatprep.subr.mxu0 0.0
    %187 = vmatpush1.msra.mxu0 0.0
    %188 = vmatprep.subr.mxu0 0.0
    %189 = vmatpush1.msra.mxu0 0.0
    %190 = vmatprep.subr.mxu0 0.0
    %191 = vmatpush1.msra.mxu0 0.0
    %192 = vmatprep.subr.mxu0 0.0
    %193 = vmatpush1.msra.mxu0 0.0
    %194 = vmatprep.subr.mxu0 0.0
    %195 = vmatpush1.msra.mxu0 0.0
    %196 = vmatprep.subr.mxu0 0.0
    %197 = vmatpush1.msra.mxu0 0.0
    %198 = vmatprep.subr.mxu0 0.0
    %199 = vmatpush1.msra.mxu0 0.0
    %200 = vmatprep.subr.mxu0 0.0
    %201 = vmatpush1.msra.mxu0 0.0
    %202 = vmatprep.subr.mxu0 0.0
    %203 = vmatpush1.msra.mxu0 0.0
    %204 = vmatprep.subr.mxu0 0.0
    %205 = vmatpush1.msra.mxu0 0.0
    %206 = vmatprep.subr.mxu0 0.0
    %207 = vmatpush1.msra.mxu0 0.0
    %208 = vmatprep.subr.mxu0 0.0
    %209 = vmatpush1.msra.mxu0 0.0
    %210 = vmatprep.subr.mxu0 0.0
    %211 = vmatpush1.msra.mxu0 0.0
    %212 = vmatprep.subr.mxu0 0.0
    %213 = vmatpush1.msra.mxu0 0.0
    %214 = vmatprep.subr.mxu0 0.0
    %215 = vmatpush1.msra.mxu0 0.0
    %216 = vmatprep.subr.mxu0 0.0
    %217 = vmatpush1.msra.mxu0 0.0
    %218 = vmatprep.subr.mxu0 0.0
    %219 = vmatpush1.msra.mxu0 0.0
    %220 = vmatprep.subr.mxu0 0.0
    %221 = vmatpush1.msra.mxu0 0.0
    %222 = vmatprep.subr.mxu0 0.0
    %223 = vmatpush1.msra.mxu0 0.0
    %224 = vmatprep.mubr.f32.mxu0 0.0
    %225 = vmatmul.mubr.f32.gmra.mrb[0].mxu0 %v158
    %v226 = vpop.f32.mrb[0].mxu0
    %v227 = vadd.f32 %v155, %v226
    %v228 = vpop.f32.mrb[0].mxu0
    %229 = vdwg.mxu0
    %v230 = vmax.f32 %v227, 0.0
    %v231 = vld [vmem:[%s6] sm:$0xff]
    %v232 = vld [vmem:[%s6 + $0x8] sm:$0xff]
    %v233 = vld [vmem:[%s6 + $0x10] sm:$0xff]
    %v234 = vld [vmem:[%s6 + $0x18] sm:$0xff]
    %v235 = vld [vmem:[#allocation2] sm:$0x1]
    %v237 = vlaneseq
    %v238 = vshrl.u32 %v237, 7
    %v239 = vsub.s32 0, %v238
    %v240 = vrot.slane %v235, %v239
    %v243 = vsel %vm71, %v230, 0
    %245 = vmatprep.subr.mxu0 0.0
    %246 = vmatpush1.msra.mxu0 %v231
    %247 = vmatprep.subr.mxu0 0.0
    %248 = vmatpush1.msra.mxu0 %v232
    %249 = vmatprep.subr.mxu0 0.0
    %250 = vmatpush1.msra.mxu0 %v233
    %251 = vmatprep.subr.mxu0 0.0
    %252 = vmatpush1.msra.mxu0 %v234
    %253 = vmatprep.subr.mxu0 0.0
    %254 = vmatpush1.msra.mxu0 0.0
    %255 = vmatprep.subr.mxu0 0.0
    %256 = vmatpush1.msra.mxu0 0.0
    %257 = vmatprep.subr.mxu0 0.0
    %258 = vmatpush1.msra.mxu0 0.0
    %259 = vmatprep.subr.mxu0 0.0
    %260 = vmatpush1.msra.mxu0 0.0
    %261 = vmatprep.subr.mxu0 0.0
    %262 = vmatpush1.msra.mxu0 0.0
    %263 = vmatprep.subr.mxu0 0.0
    %264 = vmatpush1.msra.mxu0 0.0
    %265 = vmatprep.subr.mxu0 0.0
    %266 = vmatpush1.msra.mxu0 0.0
    %267 = vmatprep.subr.mxu0 0.0
    %268 = vmatpush1.msra.mxu0 0.0
    %269 = vmatprep.subr.mxu0 0.0
    %270 = vmatpush1.msra.mxu0 0.0
    %271 = vmatprep.subr.mxu0 0.0
    %272 = vmatpush1.msra.mxu0 0.0
    %273 = vmatprep.subr.mxu0 0.0
    %274 = vmatpush1.msra.mxu0 0.0
    %275 = vmatprep.subr.mxu0 0.0
    %276 = vmatpush1.msra.mxu0 0.0
    %277 = vmatprep.subr.mxu0 0.0
    %278 = vmatpush1.msra.mxu0 0.0
    %279 = vmatprep.subr.mxu0 0.0
    %280 = vmatpush1.msra.mxu0 0.0
    %281 = vmatprep.subr.mxu0 0.0
    %282 = vmatpush1.msra.mxu0 0.0
    %283 = vmatprep.subr.mxu0 0.0
    %284 = vmatpush1.msra.mxu0 0.0
    %285 = vmatprep.subr.mxu0 0.0
    %286 = vmatpush1.msra.mxu0 0.0
    %287 = vmatprep.subr.mxu0 0.0
    %288 = vmatpush1.msra.mxu0 0.0
    %289 = vmatprep.subr.mxu0 0.0
    %290 = vmatpush1.msra.mxu0 0.0
    %291 = vmatprep.subr.mxu0 0.0
    %292 = vmatpush1.msra.mxu0 0.0
    %293 = vmatprep.subr.mxu0 0.0
    %294 = vmatpush1.msra.mxu0 0.0
    %295 = vmatprep.subr.mxu0 0.0
    %296 = vmatpush1.msra.mxu0 0.0
    %297 = vmatprep.subr.mxu0 0.0
    %298 = vmatpush1.msra.mxu0 0.0
    %299 = vmatprep.subr.mxu0 0.0
    %300 = vmatpush1.msra.mxu0 0.0
    %301 = vmatprep.subr.mxu0 0.0
    %302 = vmatpush1.msra.mxu0 0.0
    %303 = vmatprep.subr.mxu0 0.0
    %304 = vmatpush1.msra.mxu0 0.0
    %305 = vmatprep.subr.mxu0 0.0
    %306 = vmatpush1.msra.mxu0 0.0
    %307 = vmatprep.subr.mxu0 0.0
    %308 = vmatpush1.msra.mxu0 0.0
    %309 = vmatprep.mubr.f32.mxu0 0.0
    %310 = vmatmul.mubr.f32.gmra.mrb[0].mxu0 %v243
    %v311 = vpop.f32.mrb[0].mxu0
    %v312 = vadd.f32 %v240, %v311
    %v313 = vpop.f32.mrb[0].mxu0
    %314 = vdwg.mxu0
    %vm315 = vcmask 7168
    %316 = vst.msk [vmem:[%s8] sm:$0xff] %vm315, %v312
    // Predicated region
    $region42: #{tpu_custom_call.1} parent=1 // pred_check
      _
    $region43: #{tpu_custom_call.1} parent=1 // pred_check_branch
      %318 = sbr.rel (0) target = $region45
    $region44: #{tpu_custom_call.1} parent=1 // pred_region
      _
    $region45: #{tpu_custom_call.1} parent=1 // pred_fallthru
      _
    // Predicated region
    $region46: #{tpu_custom_call.1} parent=1 // pred_check
      _
    $region47: #{tpu_custom_call.1} parent=1 // pred_check_branch
      %320 = sbr.rel (0) target = $region49
    $region48: #{tpu_custom_call.1} parent=1 // pred_region
      _
    $region49: #{tpu_custom_call.1} parent=1 // pred_fallthru
      _
    %321 = vsyncpa [#allocation4], 1
    %322 = vsyncpa [#allocation6], 1

</llo_original>
